<compile_context>
chip_gen: v5e
topology: v5e:2x2
jax: 0.10.0
libtpu: 0.0.40
codegen_flags: <defaults>
</compile_context>

<pallas_src>
import functools

import jax
import jax.numpy as jnp
from jax.experimental import pallas as pl
from jax.experimental.pallas import tpu as pltpu

D = 100    # logical feature dim of every layer
DP = 128   # padded (lane-dense) feature dim


def _round_up(n, m):
    return ((n + m - 1) // m) * m


def _sigmoid(z):
    # Numerically stable sigmoid: exp() goes to the EUP, never overflows.
    # (Full-precision divide is kept so results match jax.nn.sigmoid to ~ULP;
    #  pl.reciprocal(approx=True) would be cheaper but less accurate.)
    ez = jnp.exp(-jnp.abs(z))
    return jnp.where(z >= 0, 1.0, ez) / (1.0 + ez)


def mlp_kernel(x_ref, *refs):
    """refs = [w1,b1, w2,b2, w3,b3, w4,b4, w5,b5, out_refs...]."""
    w_refs = refs[0:10:2]
    b_refs = refs[1:10:2]
    out_refs = refs[10:]

    h = x_ref[...]                                   # (TB, 128) f32
    acts = []
    for w_ref, b_ref in zip(w_refs, b_refs):
        z = jnp.dot(h, w_ref[...], preferred_element_type=jnp.float32) + b_ref[...]
        h = _sigmoid(z)
        acts.append(h)

    if len(out_refs) == 5:                           # emit a1..a5 (module semantics)
        for o_ref, a in zip(out_refs, acts):
            o_ref[...] = a
    else:                                            # fast path: only a5
        out_refs[0][...] = acts[-1]


@functools.partial(jax.jit, static_argnames=("store_intermediates", "max_batch_tile"))
def mlp_forward(x, params, *, store_intermediates=True, max_batch_tile=512):
    """x: (B, 100) f32; params: list of 5 (W_t (100,100), b (1,100)) pairs.

    Returns (a1..a5) if store_intermediates else (a5,), each (B, 100) f32.
    """
    B, d_in = x.shape
    assert d_in == D

    # --- pad feature dim to 128 and batch to a multiple of the batch tile ---
    TB = min(max_batch_tile, _round_up(B, 8))        # batch tile (sweepable)
    Bp = _round_up(B, TB)
    x_p = jnp.pad(x, ((0, Bp - B), (0, DP - D)))

    flat = []
    for w_t, b in params:
        # Zero-padded rows/cols: padded activation columns (sigmoid(0)=0.5)
        # multiply zero weight rows in the next layer -> no leakage.
        flat.append(jnp.pad(w_t.astype(jnp.float32), ((0, DP - D), (0, DP - D))))
        flat.append(jnp.pad(b.astype(jnp.float32), ((0, 0), (0, DP - D))))
    # NOTE: padded params could be kept persistently instead of re-padding here.

    num_out = 5 if store_intermediates else 1
    out_sds = tuple(jax.ShapeDtypeStruct((Bp, DP), jnp.float32) for _ in range(num_out))

    tile_spec = pl.BlockSpec((TB, DP), lambda i: (i, 0))      # pipelined batch tiles
    w_spec = pl.BlockSpec((DP, DP), lambda i: (0, 0))         # resident across grid
    b_spec = pl.BlockSpec((1, DP), lambda i: (0, 0))          # resident across grid

    in_specs = [tile_spec] + [w_spec, b_spec] * 5

    outs = pl.pallas_call(
        mlp_kernel,
        out_shape=out_sds,
        grid=(Bp // TB,),
        in_specs=in_specs,
        out_specs=tuple(tile_spec for _ in range(num_out)),
        compiler_params=pltpu.CompilerParams(
            dimension_semantics=("parallel",),                # megacore-shardable on v7x
        ),
    )(x_p, *flat)

    # Slice away batch + feature padding.
    return tuple(o[:B, :D] for o in outs)


def init_mlp_params(key, distribution="normal", delta=1.0):
    """Mirror init_params: weight ~ N(0, delta), bias = 0 ('0' -> all zeros)."""
    params = []
    keys = jax.random.split(key, 5)
    for k in keys:
        if distribution == "0":
            w = jnp.zeros((D, D), jnp.float32)
        else:  # 'normal' path (original code's 'noraml' branch)
            w = delta * jax.random.normal(k, (D, D), dtype=jnp.float32)
        b = jnp.zeros((1, D), jnp.float32)
        # store W transposed: (in, out) so the kernel does x @ W_t
        params.append((w.T, b))
    return params


def mlp_reference(x, params):
    h = x
    acts = []
    for w_t, b in params:
        h = jax.nn.sigmoid(h @ w_t + b)
        acts.append(h)
    return tuple(acts)


if __name__ == "__main__":
    key = jax.random.PRNGKey(0)
    kx, kp = jax.random.split(key)

    B = 8
    x = jax.random.normal(kx, (B, D), dtype=jnp.float32)
    params = init_mlp_params(kp, distribution="normal", delta=1.0)

    # Full path: all five activations (matches the PyTorch module's a1..a5).
    outs = mlp_forward(x, params)
    outs = jax.block_until_ready(outs)

    refs = mlp_reference(x, params)
    for o, r in zip(outs, refs):
        assert o.shape == (B, D)
        assert jnp.allclose(o, r, atol=1e-5, rtol=1e-5)

    # Fast path: only a5 written back to HBM.
    (a5_only,) = jax.block_until_ready(
        mlp_forward(x, params, store_intermediates=False))
    assert jnp.allclose(a5_only, refs[-1], atol=1e-5, rtol=1e-5)

    print("KERNEL_OK")
</pallas_src>

<mosaic_0001>
module attributes {stable_mosaic.version = 11 : i64} {
  func.func @mlp_kernel(%arg0: i32, %arg1: memref<8x128xf32, #tpu.memory_space<vmem>>, %arg2: memref<128x128xf32, #tpu.memory_space<vmem>>, %arg3: memref<1x128xf32, #tpu.memory_space<vmem>>, %arg4: memref<128x128xf32, #tpu.memory_space<vmem>>, %arg5: memref<1x128xf32, #tpu.memory_space<vmem>>, %arg6: memref<128x128xf32, #tpu.memory_space<vmem>>, %arg7: memref<1x128xf32, #tpu.memory_space<vmem>>, %arg8: memref<128x128xf32, #tpu.memory_space<vmem>>, %arg9: memref<1x128xf32, #tpu.memory_space<vmem>>, %arg10: memref<128x128xf32, #tpu.memory_space<vmem>>, %arg11: memref<1x128xf32, #tpu.memory_space<vmem>>, %arg12: memref<8x128xf32, #tpu.memory_space<vmem>>, %arg13: memref<8x128xf32, #tpu.memory_space<vmem>>, %arg14: memref<8x128xf32, #tpu.memory_space<vmem>>, %arg15: memref<8x128xf32, #tpu.memory_space<vmem>>, %arg16: memref<8x128xf32, #tpu.memory_space<vmem>>) attributes {dimension_semantics = [#tpu.dimension_semantics<parallel>], iteration_bounds = array<i64: 1>, scalar_prefetch = 0 : i64, scratch_operands = 0 : i64, tpu.core_type = #tpu.core_type<tc>, window_params = [{transform_indices = @transform_0, window_bounds = array<i64: 8, 128>}, {pipeline_mode = #tpu.pipeline_mode<synchronous>, transform_indices = @transform_1, window_bounds = array<i64: 128, 128>}, {pipeline_mode = #tpu.pipeline_mode<synchronous>, transform_indices = @transform_2, window_bounds = array<i64: 1, 128>}, {pipeline_mode = #tpu.pipeline_mode<synchronous>, transform_indices = @transform_3, window_bounds = array<i64: 128, 128>}, {pipeline_mode = #tpu.pipeline_mode<synchronous>, transform_indices = @transform_4, window_bounds = array<i64: 1, 128>}, {pipeline_mode = #tpu.pipeline_mode<synchronous>, transform_indices = @transform_5, window_bounds = array<i64: 128, 128>}, {pipeline_mode = #tpu.pipeline_mode<synchronous>, transform_indices = @transform_6, window_bounds = array<i64: 1, 128>}, {pipeline_mode = #tpu.pipeline_mode<synchronous>, transform_indices = @transform_7, window_bounds = array<i64: 128, 128>}, {pipeline_mode = #tpu.pipeline_mode<synchronous>, transform_indices = @transform_8, window_bounds = array<i64: 1, 128>}, {pipeline_mode = #tpu.pipeline_mode<synchronous>, transform_indices = @transform_9, window_bounds = array<i64: 128, 128>}, {pipeline_mode = #tpu.pipeline_mode<synchronous>, transform_indices = @transform_10, window_bounds = array<i64: 1, 128>}, {transform_indices = @transform_11, window_bounds = array<i64: 8, 128>}, {transform_indices = @transform_12, window_bounds = array<i64: 8, 128>}, {transform_indices = @transform_13, window_bounds = array<i64: 8, 128>}, {transform_indices = @transform_14, window_bounds = array<i64: 8, 128>}, {transform_indices = @transform_15, window_bounds = array<i64: 8, 128>}]} {
    %c0 = arith.constant 0 : index
    %c0_0 = arith.constant 0 : index
    %0 = vector.load %arg1[%c0, %c0_0] : memref<8x128xf32, #tpu.memory_space<vmem>>, vector<8x128xf32>
    %c0_1 = arith.constant 0 : index
    %c0_2 = arith.constant 0 : index
    %1 = vector.load %arg2[%c0_1, %c0_2] : memref<128x128xf32, #tpu.memory_space<vmem>>, vector<128x128xf32>
    %cst = arith.constant dense<0.000000e+00> : vector<8x128xf32>
    %2 = tpu.matmul %0, %1, %cst {dimension_numbers = #tpu.dot_dimension_numbers<[1], [0], [0], [1], [0, 0, 1, 1], [], []>} : vector<8x128xf32>, vector<128x128xf32>, vector<8x128xf32> -> vector<8x128xf32>
    %c0_3 = arith.constant 0 : index
    %c0_4 = arith.constant 0 : index
    %3 = vector.load %arg3[%c0_3, %c0_4] : memref<1x128xf32, #tpu.memory_space<vmem>>, vector<1x128xf32>
    %4 = vector.broadcast %3 : vector<1x128xf32> to vector<8x128xf32>
    %5 = arith.addf %2, %4 : vector<8x128xf32>
    %6 = math.absf %5 : vector<8x128xf32>
    %cst_5 = arith.constant 0.000000e+00 : f32
    %7 = vector.broadcast %cst_5 : f32 to vector<8x128xf32>
    %8 = arith.subf %7, %6 : vector<8x128xf32>
    %9 = math.exp %8 : vector<8x128xf32>
    %cst_6 = arith.constant 0.000000e+00 : f32
    %10 = vector.broadcast %cst_6 : f32 to vector<8x128xf32>
    %11 = arith.cmpf oge, %5, %10 : vector<8x128xf32>
    %cst_7 = arith.constant 1.000000e+00 : f32
    %12 = vector.broadcast %cst_7 : f32 to vector<8x128xf32>
    %13 = arith.select %11, %12, %9 : vector<8x128xi1>, vector<8x128xf32>
    %cst_8 = arith.constant 1.000000e+00 : f32
    %14 = vector.broadcast %cst_8 : f32 to vector<8x128xf32>
    %15 = arith.addf %14, %9 : vector<8x128xf32>
    %16 = arith.divf %13, %15 : vector<8x128xf32>
    %c0_9 = arith.constant 0 : index
    %c0_10 = arith.constant 0 : index
    %17 = vector.load %arg4[%c0_9, %c0_10] : memref<128x128xf32, #tpu.memory_space<vmem>>, vector<128x128xf32>
    %cst_11 = arith.constant dense<0.000000e+00> : vector<8x128xf32>
    %18 = tpu.matmul %16, %17, %cst_11 {dimension_numbers = #tpu.dot_dimension_numbers<[1], [0], [0], [1], [0, 0, 1, 1], [], []>} : vector<8x128xf32>, vector<128x128xf32>, vector<8x128xf32> -> vector<8x128xf32>
    %c0_12 = arith.constant 0 : index
    %c0_13 = arith.constant 0 : index
    %19 = vector.load %arg5[%c0_12, %c0_13] : memref<1x128xf32, #tpu.memory_space<vmem>>, vector<1x128xf32>
    %20 = vector.broadcast %19 : vector<1x128xf32> to vector<8x128xf32>
    %21 = arith.addf %18, %20 : vector<8x128xf32>
    %22 = math.absf %21 : vector<8x128xf32>
    %cst_14 = arith.constant 0.000000e+00 : f32
    %23 = vector.broadcast %cst_14 : f32 to vector<8x128xf32>
    %24 = arith.subf %23, %22 : vector<8x128xf32>
    %25 = math.exp %24 : vector<8x128xf32>
    %cst_15 = arith.constant 0.000000e+00 : f32
    %26 = vector.broadcast %cst_15 : f32 to vector<8x128xf32>
    %27 = arith.cmpf oge, %21, %26 : vector<8x128xf32>
    %cst_16 = arith.constant 1.000000e+00 : f32
    %28 = vector.broadcast %cst_16 : f32 to vector<8x128xf32>
    %29 = arith.select %27, %28, %25 : vector<8x128xi1>, vector<8x128xf32>
    %cst_17 = arith.constant 1.000000e+00 : f32
    %30 = vector.broadcast %cst_17 : f32 to vector<8x128xf32>
    %31 = arith.addf %30, %25 : vector<8x128xf32>
    %32 = arith.divf %29, %31 : vector<8x128xf32>
    %c0_18 = arith.constant 0 : index
    %c0_19 = arith.constant 0 : index
    %33 = vector.load %arg6[%c0_18, %c0_19] : memref<128x128xf32, #tpu.memory_space<vmem>>, vector<128x128xf32>
    %cst_20 = arith.constant dense<0.000000e+00> : vector<8x128xf32>
    %34 = tpu.matmul %32, %33, %cst_20 {dimension_numbers = #tpu.dot_dimension_numbers<[1], [0], [0], [1], [0, 0, 1, 1], [], []>} : vector<8x128xf32>, vector<128x128xf32>, vector<8x128xf32> -> vector<8x128xf32>
    %c0_21 = arith.constant 0 : index
    %c0_22 = arith.constant 0 : index
    %35 = vector.load %arg7[%c0_21, %c0_22] : memref<1x128xf32, #tpu.memory_space<vmem>>, vector<1x128xf32>
    %36 = vector.broadcast %35 : vector<1x128xf32> to vector<8x128xf32>
    %37 = arith.addf %34, %36 : vector<8x128xf32>
    %38 = math.absf %37 : vector<8x128xf32>
    %cst_23 = arith.constant 0.000000e+00 : f32
    %39 = vector.broadcast %cst_23 : f32 to vector<8x128xf32>
    %40 = arith.subf %39, %38 : vector<8x128xf32>
    %41 = math.exp %40 : vector<8x128xf32>
    %cst_24 = arith.constant 0.000000e+00 : f32
    %42 = vector.broadcast %cst_24 : f32 to vector<8x128xf32>
    %43 = arith.cmpf oge, %37, %42 : vector<8x128xf32>
    %cst_25 = arith.constant 1.000000e+00 : f32
    %44 = vector.broadcast %cst_25 : f32 to vector<8x128xf32>
    %45 = arith.select %43, %44, %41 : vector<8x128xi1>, vector<8x128xf32>
    %cst_26 = arith.constant 1.000000e+00 : f32
    %46 = vector.broadcast %cst_26 : f32 to vector<8x128xf32>
    %47 = arith.addf %46, %41 : vector<8x128xf32>
    %48 = arith.divf %45, %47 : vector<8x128xf32>
    %c0_27 = arith.constant 0 : index
    %c0_28 = arith.constant 0 : index
    %49 = vector.load %arg8[%c0_27, %c0_28] : memref<128x128xf32, #tpu.memory_space<vmem>>, vector<128x128xf32>
    %cst_29 = arith.constant dense<0.000000e+00> : vector<8x128xf32>
    %50 = tpu.matmul %48, %49, %cst_29 {dimension_numbers = #tpu.dot_dimension_numbers<[1], [0], [0], [1], [0, 0, 1, 1], [], []>} : vector<8x128xf32>, vector<128x128xf32>, vector<8x128xf32> -> vector<8x128xf32>
    %c0_30 = arith.constant 0 : index
    %c0_31 = arith.constant 0 : index
    %51 = vector.load %arg9[%c0_30, %c0_31] : memref<1x128xf32, #tpu.memory_space<vmem>>, vector<1x128xf32>
    %52 = vector.broadcast %51 : vector<1x128xf32> to vector<8x128xf32>
    %53 = arith.addf %50, %52 : vector<8x128xf32>
    %54 = math.absf %53 : vector<8x128xf32>
    %cst_32 = arith.constant 0.000000e+00 : f32
    %55 = vector.broadcast %cst_32 : f32 to vector<8x128xf32>
    %56 = arith.subf %55, %54 : vector<8x128xf32>
    %57 = math.exp %56 : vector<8x128xf32>
    %cst_33 = arith.constant 0.000000e+00 : f32
    %58 = vector.broadcast %cst_33 : f32 to vector<8x128xf32>
    %59 = arith.cmpf oge, %53, %58 : vector<8x128xf32>
    %cst_34 = arith.constant 1.000000e+00 : f32
    %60 = vector.broadcast %cst_34 : f32 to vector<8x128xf32>
    %61 = arith.select %59, %60, %57 : vector<8x128xi1>, vector<8x128xf32>
    %cst_35 = arith.constant 1.000000e+00 : f32
    %62 = vector.broadcast %cst_35 : f32 to vector<8x128xf32>
    %63 = arith.addf %62, %57 : vector<8x128xf32>
    %64 = arith.divf %61, %63 : vector<8x128xf32>
    %c0_36 = arith.constant 0 : index
    %c0_37 = arith.constant 0 : index
    %65 = vector.load %arg10[%c0_36, %c0_37] : memref<128x128xf32, #tpu.memory_space<vmem>>, vector<128x128xf32>
    %cst_38 = arith.constant dense<0.000000e+00> : vector<8x128xf32>
    %66 = tpu.matmul %64, %65, %cst_38 {dimension_numbers = #tpu.dot_dimension_numbers<[1], [0], [0], [1], [0, 0, 1, 1], [], []>} : vector<8x128xf32>, vector<128x128xf32>, vector<8x128xf32> -> vector<8x128xf32>
    %c0_39 = arith.constant 0 : index
    %c0_40 = arith.constant 0 : index
    %67 = vector.load %arg11[%c0_39, %c0_40] : memref<1x128xf32, #tpu.memory_space<vmem>>, vector<1x128xf32>
    %68 = vector.broadcast %67 : vector<1x128xf32> to vector<8x128xf32>
    %69 = arith.addf %66, %68 : vector<8x128xf32>
    %70 = math.absf %69 : vector<8x128xf32>
    %cst_41 = arith.constant 0.000000e+00 : f32
    %71 = vector.broadcast %cst_41 : f32 to vector<8x128xf32>
    %72 = arith.subf %71, %70 : vector<8x128xf32>
    %73 = math.exp %72 : vector<8x128xf32>
    %cst_42 = arith.constant 0.000000e+00 : f32
    %74 = vector.broadcast %cst_42 : f32 to vector<8x128xf32>
    %75 = arith.cmpf oge, %69, %74 : vector<8x128xf32>
    %cst_43 = arith.constant 1.000000e+00 : f32
    %76 = vector.broadcast %cst_43 : f32 to vector<8x128xf32>
    %77 = arith.select %75, %76, %73 : vector<8x128xi1>, vector<8x128xf32>
    %cst_44 = arith.constant 1.000000e+00 : f32
    %78 = vector.broadcast %cst_44 : f32 to vector<8x128xf32>
    %79 = arith.addf %78, %73 : vector<8x128xf32>
    %80 = arith.divf %77, %79 : vector<8x128xf32>
    %c0_45 = arith.constant 0 : index
    %c0_46 = arith.constant 0 : index
    %81 = vector.load %arg12[%c0_45, %c0_46] : memref<8x128xf32, #tpu.memory_space<vmem>>, vector<8x128xf32>
    tpu.vector_store %arg12[%c0_45, %c0_46], %16 {strides = array<i32>} : memref<8x128xf32, #tpu.memory_space<vmem>>, vector<8x128xf32>,
    %c0_47 = arith.constant 0 : index
    %c0_48 = arith.constant 0 : index
    %82 = vector.load %arg13[%c0_47, %c0_48] : memref<8x128xf32, #tpu.memory_space<vmem>>, vector<8x128xf32>
    tpu.vector_store %arg13[%c0_47, %c0_48], %32 {strides = array<i32>} : memref<8x128xf32, #tpu.memory_space<vmem>>, vector<8x128xf32>,
    %c0_49 = arith.constant 0 : index
    %c0_50 = arith.constant 0 : index
    %83 = vector.load %arg14[%c0_49, %c0_50] : memref<8x128xf32, #tpu.memory_space<vmem>>, vector<8x128xf32>
    tpu.vector_store %arg14[%c0_49, %c0_50], %48 {strides = array<i32>} : memref<8x128xf32, #tpu.memory_space<vmem>>, vector<8x128xf32>,
    %c0_51 = arith.constant 0 : index
    %c0_52 = arith.constant 0 : index
    %84 = vector.load %arg15[%c0_51, %c0_52] : memref<8x128xf32, #tpu.memory_space<vmem>>, vector<8x128xf32>
    tpu.vector_store %arg15[%c0_51, %c0_52], %64 {strides = array<i32>} : memref<8x128xf32, #tpu.memory_space<vmem>>, vector<8x128xf32>,
    %c0_53 = arith.constant 0 : index
    %c0_54 = arith.constant 0 : index
    %85 = vector.load %arg16[%c0_53, %c0_54] : memref<8x128xf32, #tpu.memory_space<vmem>>, vector<8x128xf32>
    tpu.vector_store %arg16[%c0_53, %c0_54], %80 {strides = array<i32>} : memref<8x128xf32, #tpu.memory_space<vmem>>, vector<8x128xf32>,
    return
  }
  func.func @transform_0(%arg0: i32) -> (i32, i32) {
    %c0_i32 = arith.constant 0 : i32
    %c0_i32_0 = arith.constant 0 : i32
    return %arg0, %c0_i32 : i32, i32
  }
  func.func @transform_1(%arg0: i32) -> (i32, i32) {
    %c0_i32 = arith.constant 0 : i32
    %c0_i32_0 = arith.constant 0 : i32
    %c0_i32_1 = arith.constant 0 : i32
    return %c0_i32, %c0_i32_0 : i32, i32
  }
  func.func @transform_2(%arg0: i32) -> (i32, i32) {
    %c0_i32 = arith.constant 0 : i32
    %c0_i32_0 = arith.constant 0 : i32
    %c0_i32_1 = arith.constant 0 : i32
    return %c0_i32, %c0_i32_0 : i32, i32
  }
  func.func @transform_3(%arg0: i32) -> (i32, i32) {
    %c0_i32 = arith.constant 0 : i32
    %c0_i32_0 = arith.constant 0 : i32
    %c0_i32_1 = arith.constant 0 : i32
    return %c0_i32, %c0_i32_0 : i32, i32
  }
  func.func @transform_4(%arg0: i32) -> (i32, i32) {
    %c0_i32 = arith.constant 0 : i32
    %c0_i32_0 = arith.constant 0 : i32
    %c0_i32_1 = arith.constant 0 : i32
    return %c0_i32, %c0_i32_0 : i32, i32
  }
  func.func @transform_5(%arg0: i32) -> (i32, i32) {
    %c0_i32 = arith.constant 0 : i32
    %c0_i32_0 = arith.constant 0 : i32
    %c0_i32_1 = arith.constant 0 : i32
    return %c0_i32, %c0_i32_0 : i32, i32
  }
  func.func @transform_6(%arg0: i32) -> (i32, i32) {
    %c0_i32 = arith.constant 0 : i32
    %c0_i32_0 = arith.constant 0 : i32
    %c0_i32_1 = arith.constant 0 : i32
    return %c0_i32, %c0_i32_0 : i32, i32
  }
  func.func @transform_7(%arg0: i32) -> (i32, i32) {
    %c0_i32 = arith.constant 0 : i32
    %c0_i32_0 = arith.constant 0 : i32
    %c0_i32_1 = arith.constant 0 : i32
    return %c0_i32, %c0_i32_0 : i32, i32
  }
  func.func @transform_8(%arg0: i32) -> (i32, i32) {
    %c0_i32 = arith.constant 0 : i32
    %c0_i32_0 = arith.constant 0 : i32
    %c0_i32_1 = arith.constant 0 : i32
    return %c0_i32, %c0_i32_0 : i32, i32
  }
  func.func @transform_9(%arg0: i32) -> (i32, i32) {
    %c0_i32 = arith.constant 0 : i32
    %c0_i32_0 = arith.constant 0 : i32
    %c0_i32_1 = arith.constant 0 : i32
    return %c0_i32, %c0_i32_0 : i32, i32
  }
  func.func @transform_10(%arg0: i32) -> (i32, i32) {
    %c0_i32 = arith.constant 0 : i32
    %c0_i32_0 = arith.constant 0 : i32
    %c0_i32_1 = arith.constant 0 : i32
    return %c0_i32, %c0_i32_0 : i32, i32
  }
  func.func @transform_11(%arg0: i32) -> (i32, i32) {
    %c0_i32 = arith.constant 0 : i32
    %c0_i32_0 = arith.constant 0 : i32
    return %arg0, %c0_i32 : i32, i32
  }
  func.func @transform_12(%arg0: i32) -> (i32, i32) {
    %c0_i32 = arith.constant 0 : i32
    %c0_i32_0 = arith.constant 0 : i32
    return %arg0, %c0_i32 : i32, i32
  }
  func.func @transform_13(%arg0: i32) -> (i32, i32) {
    %c0_i32 = arith.constant 0 : i32
    %c0_i32_0 = arith.constant 0 : i32
    return %arg0, %c0_i32 : i32, i32
  }
  func.func @transform_14(%arg0: i32) -> (i32, i32) {
    %c0_i32 = arith.constant 0 : i32
    %c0_i32_0 = arith.constant 0 : i32
    return %arg0, %c0_i32 : i32, i32
  }
  func.func @transform_15(%arg0: i32) -> (i32, i32) {
    %c0_i32 = arith.constant 0 : i32
    %c0_i32_0 = arith.constant 0 : i32
    return %arg0, %c0_i32 : i32, i32
  }
}

</mosaic_0001>

<llo_original>
// kernel: mlp_forward.1
$region0: #{mlp_forward.1}
  #allocation0 [shape = 'u32[]', space=smem, size = 0x4, offset = 0x4, fixed_abs, tag = 'smem constant byte address 0x4 - core index']
  #allocation1 [shape = 'u32[72,128]{1,0:T(1,128)}', space=vmem, size = 0x9000, scoped, tag = 'internal scratch']
  %s0 = inlined_call_operand.vmem [shape: f32[8,128], index: 0, kind: input, shape index: {}]
  %s1 = inlined_call_operand.vmem [shape: f32[128,128], index: 1, kind: input, shape index: {}]
  %s2 = inlined_call_operand.vmem [shape: f32[1,128], index: 2, kind: input, shape index: {}]
  %s3 = inlined_call_operand.vmem [shape: f32[128,128], index: 3, kind: input, shape index: {}]
  %s4 = inlined_call_operand.vmem [shape: f32[1,128], index: 4, kind: input, shape index: {}]
  %s5 = inlined_call_operand.vmem [shape: f32[128,128], index: 5, kind: input, shape index: {}]
  %s6 = inlined_call_operand.vmem [shape: f32[1,128], index: 6, kind: input, shape index: {}]
  %s7 = inlined_call_operand.vmem [shape: f32[128,128], index: 7, kind: input, shape index: {}]
  %s8 = inlined_call_operand.vmem [shape: f32[1,128], index: 8, kind: input, shape index: {}]
  %s9 = inlined_call_operand.vmem [shape: f32[128,128], index: 9, kind: input, shape index: {}]
  %s10 = inlined_call_operand.vmem [shape: f32[1,128], index: 10, kind: input, shape index: {}]
  %s11 = inlined_call_operand.hbm [shape: f32[8,128], index: 11, kind: output, shape index: {0}]
  %s12 = inlined_call_operand.hbm [shape: f32[8,128], index: 12, kind: output, shape index: {1}]
  %s13 = inlined_call_operand.hbm [shape: f32[8,128], index: 13, kind: output, shape index: {2}]
  %s14 = inlined_call_operand.hbm [shape: f32[8,128], index: 14, kind: output, shape index: {3}]
  %s15 = inlined_call_operand.hbm [shape: f32[8,128], index: 15, kind: output, shape index: {4}]
  %16 = xla_tuple %s11, %s12, %s13, %s14, %s15
  %s17 = sld [smem:[#allocation0]]
  $region86: #{mlp_forward.1} parent=0
    _
  %s19 = ssub.s32 1, %s17
  %s20 = scalar_select 0, %s19, %s17
  $region1: #{mlp_forward.1} parent=0
    #allocation2 [shape = 'u8[4096]{0}', space=vmem, size = 0x1000, scoped, tag = 'output window, operand 0, single buffered']
    #allocation3 [shape = 's32[1]{0}', space=sflag, size = 0x4, scoped, tag = 'scoped memory for mlp_forward.1']
    #allocation4 [shape = 'u8[4096]{0}', space=vmem, size = 0x1000, scoped, tag = 'output window, operand 1, single buffered']
    #allocation5 [shape = 's32[1]{0}', space=sflag, size = 0x4, scoped, tag = 'scoped memory for mlp_forward.1']
    #allocation6 [shape = 'u8[4096]{0}', space=vmem, size = 0x1000, scoped, tag = 'output window, operand 2, single buffered']
    #allocation7 [shape = 'u8[4096]{0}', space=vmem, size = 0x1000, scoped, tag = 'output window, operand 3, single buffered']
    #allocation8 [shape = 's32[1]{0}', space=sflag, size = 0x4, scoped, tag = 'scoped memory for mlp_forward.1']
    #allocation9 [shape = 'u8[4096]{0}', space=vmem, size = 0x1000, scoped, tag = 'output window, operand 4, single buffered']
    %21 = vsyncpa [#allocation3], 0
    %22 = vsyncpa [#allocation5], 0
    %23 = vsyncpa [#allocation8], 0
    // Predicated region
    $region2: #{mlp_forward.1} parent=1 // pred_check
      _
    $region3: #{mlp_forward.1} parent=1 // pred_check_branch
      %25 = sbr.rel (0) target = $region5
    $region4: #{mlp_forward.1} parent=1 // pred_region
      _
    $region5: #{mlp_forward.1} parent=1 // pred_fallthru
      _
    // Predicated region
    $region6: #{mlp_forward.1} parent=1 // pred_check
      _
    $region7: #{mlp_forward.1} parent=1 // pred_check_branch
      %27 = sbr.rel (0) target = $region9
    $region8: #{mlp_forward.1} parent=1 // pred_region
      _
    $region9: #{mlp_forward.1} parent=1 // pred_fallthru
      _
    // Predicated region
    $region10: #{mlp_forward.1} parent=1 // pred_check
      _
    $region11: #{mlp_forward.1} parent=1 // pred_check_branch
      %29 = sbr.rel (0) target = $region13
    $region12: #{mlp_forward.1} parent=1 // pred_region
      _
    $region13: #{mlp_forward.1} parent=1 // pred_fallthru
      _
    // Predicated region
    $region14: #{mlp_forward.1} parent=1 // pred_check
      _
    $region15: #{mlp_forward.1} parent=1 // pred_check_branch
      %31 = sbr.rel (0) target = $region17
    $region16: #{mlp_forward.1} parent=1 // pred_region
      _
    $region17: #{mlp_forward.1} parent=1 // pred_fallthru
      _
    // Predicated region
    $region18: #{mlp_forward.1} parent=1 // pred_check
      _
    $region19: #{mlp_forward.1} parent=1 // pred_check_branch
      %33 = sbr.rel (0) target = $region21
    $region20: #{mlp_forward.1} parent=1 // pred_region
      _
    $region21: #{mlp_forward.1} parent=1 // pred_fallthru
      _
    // Predicated region
    $region22: #{mlp_forward.1} parent=1 // pred_check
      _
    $region23: #{mlp_forward.1} parent=1 // pred_check_branch
      %35 = sbr.rel (0) target = $region25
    $region24: #{mlp_forward.1} parent=1 // pred_region
      _
    $region25: #{mlp_forward.1} parent=1 // pred_fallthru
      _
    // Predicated region
    $region26: #{mlp_forward.1} parent=1 // pred_check
      _
    $region27: #{mlp_forward.1} parent=1 // pred_check_branch
      %37 = sbr.rel (0) target = $region29
    $region28: #{mlp_forward.1} parent=1 // pred_region
      _
    $region29: #{mlp_forward.1} parent=1 // pred_fallthru
      _
    // Predicated region
    $region30: #{mlp_forward.1} parent=1 // pred_check
      _
    $region31: #{mlp_forward.1} parent=1 // pred_check_branch
      %39 = sbr.rel (0) target = $region33
    $region32: #{mlp_forward.1} parent=1 // pred_region
      _
    $region33: #{mlp_forward.1} parent=1 // pred_fallthru
      _
    // Predicated region
    $region34: #{mlp_forward.1} parent=1 // pred_check
      _
    $region35: #{mlp_forward.1} parent=1 // pred_check_branch
      %41 = sbr.rel (0) target = $region37
    $region36: #{mlp_forward.1} parent=1 // pred_region
      _
    $region37: #{mlp_forward.1} parent=1 // pred_fallthru
      _
    // Predicated region
    $region38: #{mlp_forward.1} parent=1 // pred_check
      _
    $region39: #{mlp_forward.1} parent=1 // pred_check_branch
      %43 = sbr.rel (0) target = $region41
    $region40: #{mlp_forward.1} parent=1 // pred_region
      _
    $region41: #{mlp_forward.1} parent=1 // pred_fallthru
      _
    // Predicated region
    $region42: #{mlp_forward.1} parent=1 // pred_check
      _
    $region43: #{mlp_forward.1} parent=1 // pred_check_branch
      %45 = sbr.rel (0) target = $region45
    $region44: #{mlp_forward.1} parent=1 // pred_region
      _
    $region45: #{mlp_forward.1} parent=1 // pred_fallthru
      _
    %v46 = vld [vmem:[%s0] sm:$0xff]
    %v47 = vld [vmem:[%s1] sm:$0xff]
    %v48 = vld [vmem:[%s1 + $0x8] sm:$0xff]
    %v49 = vld [vmem:[%s1 + $0x10] sm:$0xff]
    %v50 = vld [vmem:[%s1 + $0x18] sm:$0xff]
    %v51 = vld [vmem:[%s1 + $0x20] sm:$0xff]
    %v52 = vld [vmem:[%s1 + $0x28] sm:$0xff]
    %v53 = vld [vmem:[%s1 + $0x30] sm:$0xff]
    %v54 = vld [vmem:[%s1 + $0x38] sm:$0xff]
    %v55 = vld [vmem:[%s1 + $0x40] sm:$0xff]
    %v56 = vld [vmem:[%s1 + $0x48] sm:$0xff]
    %v57 = vld [vmem:[%s1 + $0x50] sm:$0xff]
    %v58 = vld [vmem:[%s1 + $0x58] sm:$0xff]
    %v59 = vld [vmem:[%s1 + $0x60] sm:$0xff]
    %v60 = vld [vmem:[%s1 + $0x68] sm:$0xff]
    %v61 = vld [vmem:[%s1 + $0x70] sm:$0xff]
    %v62 = vld [vmem:[%s1 + $0x78] sm:$0xff]
    %v63 = vld [vmem:[%s2] sm:$0x1]
    %v65 = vperm.slane %v63, 0
    %67 = vmatpush.msra.mxu0 %v62
    %68 = vmatpush.msra.mxu0 %v61
    %69 = vmatpush.msra.mxu0 %v60
    %70 = vmatpush.msra.mxu0 %v59
    %71 = vmatpush.msra.mxu0 %v58
    %72 = vmatpush.msra.mxu0 %v57
    %73 = vmatpush.msra.mxu0 %v56
    %74 = vmatpush.msra.mxu0 %v55
    %75 = vmatpush.msra.mxu0 %v54
    %76 = vmatpush.msra.mxu0 %v53
    %77 = vmatpush.msra.mxu0 %v52
    %78 = vmatpush.msra.mxu0 %v51
    %79 = vmatpush.msra.mxu0 %v50
    %80 = vmatpush.msra.mxu0 %v49
    %81 = vmatpush.msra.mxu0 %v48
    %82 = vmatpush.msra.mxu0 %v47
    %83 = vmatmul.f32.gmra.mxu0 %v46
    %v84 = vpop.f32.mrf.mxu0
    %v85 = vadd.f32 %v65, %v84
    %86 = vdwg.mxu0
    %v87 = vand.u32 2147483647, %v85
    %v88 = vsub.f32 0.0, %v87
    %v89 = vmul.f32 %v88, 1.442695
    %v90 = vpow.pop %v89
    %vm91 = vcmp.ge.f32.partialorder %v85, 0.0
    %v92 = vsel %vm91, 1.0, %v90
    %v93 = vadd.f32 %v90, 1.0
    %v94 = vrcp.pop %v93
    %v95 = vmul.f32 %v93, %v94
    %v96 = vsub.f32 1.0, %v95
    %v97 = vmul.f32 %v94, %v96
    %v98 = vadd.f32 %v94, %v97
    %vm99 = vweird.f32 %v93
    %vm100 = vweird.f32 %v94
    %vm101 = vmor %vm99, %vm100
    %v102 = vsel %vm101, %v94, %v98
    %v103 = vand.u32 2147483647, %v93
    %vm104 = vcmp.eq.f32.partialorder %v103, 8.507059e+37
    %v105 = vand.u32 %v93, 2147483648
    %v106 = vor.u32 1.1754944e-38, %v105
    %v107 = vsel %vm104, %v106, %v102
    %v108 = vmul.f32 %v92, %v107
    %v109 = vld [vmem:[%s3] sm:$0xff]
    %v110 = vld [vmem:[%s3 + $0x8] sm:$0xff]
    %v111 = vld [vmem:[%s3 + $0x10] sm:$0xff]
    %v112 = vld [vmem:[%s3 + $0x18] sm:$0xff]
    %v113 = vld [vmem:[%s3 + $0x20] sm:$0xff]
    %v114 = vld [vmem:[%s3 + $0x28] sm:$0xff]
    %v115 = vld [vmem:[%s3 + $0x30] sm:$0xff]
    %v116 = vld [vmem:[%s3 + $0x38] sm:$0xff]
    %v117 = vld [vmem:[%s3 + $0x40] sm:$0xff]
    %v118 = vld [vmem:[%s3 + $0x48] sm:$0xff]
    %v119 = vld [vmem:[%s3 + $0x50] sm:$0xff]
    %v120 = vld [vmem:[%s3 + $0x58] sm:$0xff]
    %v121 = vld [vmem:[%s3 + $0x60] sm:$0xff]
    %v122 = vld [vmem:[%s3 + $0x68] sm:$0xff]
    %v123 = vld [vmem:[%s3 + $0x70] sm:$0xff]
    %v124 = vld [vmem:[%s3 + $0x78] sm:$0xff]
    %v125 = vld [vmem:[%s4] sm:$0x1]
    %v127 = vperm.slane %v125, 0
    %129 = vmatpush.msra.mxu0 %v124
    %130 = vmatpush.msra.mxu0 %v123
    %131 = vmatpush.msra.mxu0 %v122
    %132 = vmatpush.msra.mxu0 %v121
    %133 = vmatpush.msra.mxu0 %v120
    %134 = vmatpush.msra.mxu0 %v119
    %135 = vmatpush.msra.mxu0 %v118
    %136 = vmatpush.msra.mxu0 %v117
    %137 = vmatpush.msra.mxu0 %v116
    %138 = vmatpush.msra.mxu0 %v115
    %139 = vmatpush.msra.mxu0 %v114
    %140 = vmatpush.msra.mxu0 %v113
    %141 = vmatpush.msra.mxu0 %v112
    %142 = vmatpush.msra.mxu0 %v111
    %143 = vmatpush.msra.mxu0 %v110
    %144 = vmatpush.msra.mxu0 %v109
    %145 = vmatmul.f32.gmra.mxu0 %v108
    %v146 = vpop.f32.mrf.mxu0
    %v147 = vadd.f32 %v127, %v146
    %148 = vdwg.mxu0
    %v149 = vand.u32 2147483647, %v147
    %v150 = vsub.f32 0.0, %v149
    %v151 = vmul.f32 %v150, 1.442695
    %v152 = vpow.pop %v151
    %vm153 = vcmp.ge.f32.partialorder %v147, 0.0
    %v154 = vsel %vm153, 1.0, %v152
    %v155 = vadd.f32 %v152, 1.0
    %v156 = vrcp.pop %v155
    %v157 = vmul.f32 %v155, %v156
    %v158 = vsub.f32 1.0, %v157
    %v159 = vmul.f32 %v156, %v158
    %v160 = vadd.f32 %v156, %v159
    %vm161 = vweird.f32 %v155
    %vm162 = vweird.f32 %v156
    %vm163 = vmor %vm161, %vm162
    %v164 = vsel %vm163, %v156, %v160
    %v165 = vand.u32 2147483647, %v155
    %vm166 = vcmp.eq.f32.partialorder %v165, 8.507059e+37
    %v167 = vand.u32 %v155, 2147483648
    %v168 = vor.u32 1.1754944e-38, %v167
    %v169 = vsel %vm166, %v168, %v164
    %v170 = vmul.f32 %v154, %v169
    %v171 = vld [vmem:[%s5] sm:$0xff]
    %v172 = vld [vmem:[%s5 + $0x8] sm:$0xff]
    %v173 = vld [vmem:[%s5 + $0x10] sm:$0xff]
    %v174 = vld [vmem:[%s5 + $0x18] sm:$0xff]
    %v175 = vld [vmem:[%s5 + $0x20] sm:$0xff]
    %v176 = vld [vmem:[%s5 + $0x28] sm:$0xff]
    %v177 = vld [vmem:[%s5 + $0x30] sm:$0xff]
    %v178 = vld [vmem:[%s5 + $0x38] sm:$0xff]
    %v179 = vld [vmem:[%s5 + $0x40] sm:$0xff]
    %v180 = vld [vmem:[%s5 + $0x48] sm:$0xff]
    %v181 = vld [vmem:[%s5 + $0x50] sm:$0xff]
    %v182 = vld [vmem:[%s5 + $0x58] sm:$0xff]
    %v183 = vld [vmem:[%s5 + $0x60] sm:$0xff]
    %v184 = vld [vmem:[%s5 + $0x68] sm:$0xff]
    %v185 = vld [vmem:[%s5 + $0x70] sm:$0xff]
    %v186 = vld [vmem:[%s5 + $0x78] sm:$0xff]
    %v187 = vld [vmem:[%s6] sm:$0x1]
    %v189 = vperm.slane %v187, 0
    %191 = vmatpush.msra.mxu0 %v186
    %192 = vmatpush.msra.mxu0 %v185
    %193 = vmatpush.msra.mxu0 %v184
    %194 = vmatpush.msra.mxu0 %v183
    %195 = vmatpush.msra.mxu0 %v182
    %196 = vmatpush.msra.mxu0 %v181
    %197 = vmatpush.msra.mxu0 %v180
    %198 = vmatpush.msra.mxu0 %v179
    %199 = vmatpush.msra.mxu0 %v178
    %200 = vmatpush.msra.mxu0 %v177
    %201 = vmatpush.msra.mxu0 %v176
    %202 = vmatpush.msra.mxu0 %v175
    %203 = vmatpush.msra.mxu0 %v174
    %204 = vmatpush.msra.mxu0 %v173
    %205 = vmatpush.msra.mxu0 %v172
    %206 = vmatpush.msra.mxu0 %v171
    %207 = vmatmul.f32.gmra.mxu0 %v170
    %v208 = vpop.f32.mrf.mxu0
    %v209 = vadd.f32 %v189, %v208
    %210 = vdwg.mxu0
    %v211 = vand.u32 2147483647, %v209
    %v212 = vsub.f32 0.0, %v211
    %v213 = vmul.f32 %v212, 1.442695
    %v214 = vpow.pop %v213
    %vm215 = vcmp.ge.f32.partialorder %v209, 0.0
    %v216 = vsel %vm215, 1.0, %v214
    %v217 = vadd.f32 %v214, 1.0
    %v218 = vrcp.pop %v217
    %v219 = vmul.f32 %v217, %v218
    %v220 = vsub.f32 1.0, %v219
    %v221 = vmul.f32 %v218, %v220
    %v222 = vadd.f32 %v218, %v221
    %vm223 = vweird.f32 %v217
    %vm224 = vweird.f32 %v218
    %vm225 = vmor %vm223, %vm224
    %v226 = vsel %vm225, %v218, %v222
    %v227 = vand.u32 2147483647, %v217
    %vm228 = vcmp.eq.f32.partialorder %v227, 8.507059e+37
    %v229 = vand.u32 %v217, 2147483648
    %v230 = vor.u32 1.1754944e-38, %v229
    %v231 = vsel %vm228, %v230, %v226
    %v232 = vmul.f32 %v216, %v231
    %v233 = vld [vmem:[%s7] sm:$0xff]
    %v234 = vld [vmem:[%s7 + $0x8] sm:$0xff]
    %v235 = vld [vmem:[%s7 + $0x10] sm:$0xff]
    %v236 = vld [vmem:[%s7 + $0x18] sm:$0xff]
    %v237 = vld [vmem:[%s7 + $0x20] sm:$0xff]
    %v238 = vld [vmem:[%s7 + $0x28] sm:$0xff]
    %v239 = vld [vmem:[%s7 + $0x30] sm:$0xff]
    %v240 = vld [vmem:[%s7 + $0x38] sm:$0xff]
    %v241 = vld [vmem:[%s7 + $0x40] sm:$0xff]
    %v242 = vld [vmem:[%s7 + $0x48] sm:$0xff]
    %v243 = vld [vmem:[%s7 + $0x50] sm:$0xff]
    %v244 = vld [vmem:[%s7 + $0x58] sm:$0xff]
    %v245 = vld [vmem:[%s7 + $0x60] sm:$0xff]
    %v246 = vld [vmem:[%s7 + $0x68] sm:$0xff]
    %v247 = vld [vmem:[%s7 + $0x70] sm:$0xff]
    %v248 = vld [vmem:[%s7 + $0x78] sm:$0xff]
    %v249 = vld [vmem:[%s8] sm:$0x1]
    %v251 = vperm.slane %v249, 0
    %253 = vmatpush.msra.mxu0 %v248
    %254 = vmatpush.msra.mxu0 %v247
    %255 = vmatpush.msra.mxu0 %v246
    %256 = vmatpush.msra.mxu0 %v245
    %257 = vmatpush.msra.mxu0 %v244
    %258 = vmatpush.msra.mxu0 %v243
    %259 = vmatpush.msra.mxu0 %v242
    %260 = vmatpush.msra.mxu0 %v241
    %261 = vmatpush.msra.mxu0 %v240
    %262 = vmatpush.msra.mxu0 %v239
    %263 = vmatpush.msra.mxu0 %v238
    %264 = vmatpush.msra.mxu0 %v237
    %265 = vmatpush.msra.mxu0 %v236
    %266 = vmatpush.msra.mxu0 %v235
    %267 = vmatpush.msra.mxu0 %v234
    %268 = vmatpush.msra.mxu0 %v233
    %269 = vmatmul.f32.gmra.mxu0 %v232
    %v270 = vpop.f32.mrf.mxu0
    %v271 = vadd.f32 %v251, %v270
    %272 = vdwg.mxu0
    %v273 = vand.u32 2147483647, %v271
    %v274 = vsub.f32 0.0, %v273
    %v275 = vmul.f32 %v274, 1.442695
    %v276 = vpow.pop %v275
    %vm277 = vcmp.ge.f32.partialorder %v271, 0.0
    %v278 = vsel %vm277, 1.0, %v276
    %v279 = vadd.f32 %v276, 1.0
    %v280 = vrcp.pop %v279
    %v281 = vmul.f32 %v279, %v280
    %v282 = vsub.f32 1.0, %v281
    %v283 = vmul.f32 %v280, %v282
    %v284 = vadd.f32 %v280, %v283
    %vm285 = vweird.f32 %v279
    %vm286 = vweird.f32 %v280
    %vm287 = vmor %vm285, %vm286
    %v288 = vsel %vm287, %v280, %v284
    %v289 = vand.u32 2147483647, %v279
    %vm290 = vcmp.eq.f32.partialorder %v289, 8.507059e+37
    %v291 = vand.u32 %v279, 2147483648
    %v292 = vor.u32 1.1754944e-38, %v291
    %v293 = vsel %vm290, %v292, %v288
    %v294 = vmul.f32 %v278, %v293
    %v295 = vld [vmem:[%s9] sm:$0xff]
    %v296 = vld [vmem:[%s9 + $0x8] sm:$0xff]
    %v297 = vld [vmem:[%s9 + $0x10] sm:$0xff]
    %v298 = vld [vmem:[%s9 + $0x18] sm:$0xff]
    %v299 = vld [vmem:[%s9 + $0x20] sm:$0xff]
    %v300 = vld [vmem:[%s9 + $0x28] sm:$0xff]
    %v301 = vld [vmem:[%s9 + $0x30] sm:$0xff]
    %v302 = vld [vmem:[%s9 + $0x38] sm:$0xff]
    %v303 = vld [vmem:[%s9 + $0x40] sm:$0xff]
    %v304 = vld [vmem:[%s9 + $0x48] sm:$0xff]
    %v305 = vld [vmem:[%s9 + $0x50] sm:$0xff]
    %v306 = vld [vmem:[%s9 + $0x58] sm:$0xff]
    %v307 = vld [vmem:[%s9 + $0x60] sm:$0xff]
    %v308 = vld [vmem:[%s9 + $0x68] sm:$0xff]
    %v309 = vld [vmem:[%s9 + $0x70] sm:$0xff]
    %v310 = vld [vmem:[%s9 + $0x78] sm:$0xff]
    %v311 = vld [vmem:[%s10] sm:$0x1]
    %v313 = vperm.slane %v311, 0
    %315 = vmatpush.msra.mxu0 %v310
    %316 = vmatpush.msra.mxu0 %v309
    %317 = vmatpush.msra.mxu0 %v308
    %318 = vmatpush.msra.mxu0 %v307
    %319 = vmatpush.msra.mxu0 %v306
    %320 = vmatpush.msra.mxu0 %v305
    %321 = vmatpush.msra.mxu0 %v304
    %322 = vmatpush.msra.mxu0 %v303
    %323 = vmatpush.msra.mxu0 %v302
    %324 = vmatpush.msra.mxu0 %v301
    %325 = vmatpush.msra.mxu0 %v300
    %326 = vmatpush.msra.mxu0 %v299
    %327 = vmatpush.msra.mxu0 %v298
    %328 = vmatpush.msra.mxu0 %v297
    %329 = vmatpush.msra.mxu0 %v296
    %330 = vmatpush.msra.mxu0 %v295
    %331 = vmatmul.f32.gmra.mxu0 %v294
    %v332 = vpop.f32.mrf.mxu0
    %v333 = vadd.f32 %v313, %v332
    %334 = vdwg.mxu0
    %v335 = vand.u32 2147483647, %v333
    %v336 = vsub.f32 0.0, %v335
    %v337 = vmul.f32 %v336, 1.442695
    %v338 = vpow.pop %v337
    %vm339 = vcmp.ge.f32.partialorder %v333, 0.0
    %v340 = vsel %vm339, 1.0, %v338
    %v341 = vadd.f32 %v338, 1.0
    %v342 = vrcp.pop %v341
    %v343 = vmul.f32 %v341, %v342
    %v344 = vsub.f32 1.0, %v343
    %v345 = vmul.f32 %v342, %v344
    %v346 = vadd.f32 %v342, %v345
    %vm347 = vweird.f32 %v341
    %vm348 = vweird.f32 %v342
    %vm349 = vmor %vm347, %vm348
    %v350 = vsel %vm349, %v342, %v346
    %v351 = vand.u32 2147483647, %v341
    %vm352 = vcmp.eq.f32.partialorder %v351, 8.507059e+37
    %v353 = vand.u32 %v341, 2147483648
    %v354 = vor.u32 1.1754944e-38, %v353
    %v355 = vsel %vm352, %v354, %v350
    %v356 = vmul.f32 %v340, %v355
    %357 = vst [vmem:[#allocation2] sm:$0xff] %v108
    %358 = vst [vmem:[#allocation4] sm:$0xff] %v170
    %359 = vst [vmem:[#allocation6] sm:$0xff] %v232
    %360 = vst [vmem:[#allocation7] sm:$0xff] %v294
    %361 = vst [vmem:[#allocation9] sm:$0xff] %v356
    // Predicated region
    $region46: #{mlp_forward.1} parent=1 // pred_check
      _
    $region47: #{mlp_forward.1} parent=1 // pred_check_branch
      %363 = sbr.rel (0) target = $region49
    $region48: #{mlp_forward.1} parent=1 // pred_region
      %365 = vsyncadd [#allocation3], 0
      %s367 = sshll.u32 [#allocation2], 4
      %s368 = int_to_ptr.vmem [resolvable:$true] %s367
      %s369 = sshll.u32 %s11, 4
      %s370 = int_to_ptr.hbm [resolvable:$true] %s369
      %372 = dma.vmem_to_hbm [thread:$0]  %s368, 128, %s370, [#allocation3]
    $region49: #{mlp_forward.1} parent=1 // pred_fallthru
      _
    // Predicated region
    $region50: #{mlp_forward.1} parent=1 // pred_check
      _
    $region51: #{mlp_forward.1} parent=1 // pred_check_branch
      %374 = sbr.rel (0) target = $region53
    $region52: #{mlp_forward.1} parent=1 // pred_region
      %376 = vsyncadd [#allocation5], 0
      %s378 = sshll.u32 [#allocation4], 4
      %s379 = int_to_ptr.vmem [resolvable:$true] %s378
      %s380 = sshll.u32 %s12, 4
      %s381 = int_to_ptr.hbm [resolvable:$true] %s380
      %383 = dma.vmem_to_hbm [thread:$0]  %s379, 128, %s381, [#allocation5]
    $region53: #{mlp_forward.1} parent=1 // pred_fallthru
      _
    // Predicated region
    $region54: #{mlp_forward.1} parent=1 // pred_check
      _
    $region55: #{mlp_forward.1} parent=1 // pred_check_branch
      %385 = sbr.rel (0) target = $region57
    $region56: #{mlp_forward.1} parent=1 // pred_region
      %387 = vsyncadd [#allocation5], 0
      %s389 = sshll.u32 [#allocation6], 4
      %s390 = int_to_ptr.vmem [resolvable:$true] %s389
      %s391 = sshll.u32 %s13, 4
      %s392 = int_to_ptr.hbm [resolvable:$true] %s391
      %394 = dma.vmem_to_hbm [thread:$0]  %s390, 128, %s392, [#allocation5]
    $region57: #{mlp_forward.1} parent=1 // pred_fallthru
      _
    // Predicated region
    $region58: #{mlp_forward.1} parent=1 // pred_check
      _
    $region59: #{mlp_forward.1} parent=1 // pred_check_branch
      %396 = sbr.rel (0) target = $region61
    $region60: #{mlp_forward.1} parent=1 // pred_region
      %398 = vsyncadd [#allocation8], 0
      %s400 = sshll.u32 [#allocation7], 4
      %s401 = int_to_ptr.vmem [resolvable:$true] %s400
      %s402 = sshll.u32 %s14, 4
      %s403 = int_to_ptr.hbm [resolvable:$true] %s402
      %405 = dma.vmem_to_hbm [thread:$0]  %s401, 128, %s403, [#allocation8]
    $region61: #{mlp_forward.1} parent=1 // pred_fallthru
      _
    // Predicated region
    $region62: #{mlp_forward.1} parent=1 // pred_check
      _
    $region63: #{mlp_forward.1} parent=1 // pred_check_branch
      %407 = sbr.rel (0) target = $region65
    $region64: #{mlp_forward.1} parent=1 // pred_region
      %409 = vsyncadd [#allocation8], 0
      %s411 = sshll.u32 [#allocation9], 4
      %s412 = int_to_ptr.vmem [resolvable:$true] %s411
      %s413 = sshll.u32 %s15, 4
      %s414 = int_to_ptr.hbm [resolvable:$true] %s413
      %416 = dma.vmem_to_hbm [thread:$0]  %s412, 128, %s414, [#allocation8]
    $region65: #{mlp_forward.1} parent=1 // pred_fallthru
      _
    // Predicated region
    $region66: #{mlp_forward.1} parent=1 // pred_check
      _
    $region67: #{mlp_forward.1} parent=1 // pred_check_branch
      %418 = sbr.rel (0) target = $region69
    $region68: #{mlp_forward.1} parent=1 // pred_region
      %420 = dma.done [#allocation3], 128
    $region69: #{mlp_forward.1} parent=1 // pred_fallthru
      _
    // Predicated region
    $region70: #{mlp_forward.1} parent=1 // pred_check
      _
    $region71: #{mlp_forward.1} parent=1 // pred_check_branch
      %422 = sbr.rel (0) target = $region73
    $region72: #{mlp_forward.1} parent=1 // pred_region
      %424 = dma.done [#allocation5], 128
    $region73: #{mlp_forward.1} parent=1 // pred_fallthru
      _
    // Predicated region
    $region74: #{mlp_forward.1} parent=1 // pred_check
      _
    $region75: #{mlp_forward.1} parent=1 // pred_check_branch
      %426 = sbr.rel (0) target = $region77
    $region76: #{mlp_forward.1} parent=1 // pred_region
      %428 = dma.done [#allocation5], 128
    $region77: #{mlp_forward.1} parent=1 // pred_fallthru
      _
    // Predicated region
    $region78: #{mlp_forward.1} parent=1 // pred_check
      _
    $region79: #{mlp_forward.1} parent=1 // pred_check_branch
      %430 = sbr.rel (0) target = $region81
    $region80: #{mlp_forward.1} parent=1 // pred_region
      %432 = dma.done [#allocation8], 128
    $region81: #{mlp_forward.1} parent=1 // pred_fallthru
      _
    // Predicated region
    $region82: #{mlp_forward.1} parent=1 // pred_check
      _
    $region83: #{mlp_forward.1} parent=1 // pred_check_branch
      %434 = sbr.rel (0) target = $region85
    $region84: #{mlp_forward.1} parent=1 // pred_region
      %436 = dma.done [#allocation8], 128
    $region85: #{mlp_forward.1} parent=1 // pred_fallthru
      _
    %437 = vsyncpa [#allocation3], 1
    %438 = vsyncpa [#allocation5], 1
    %439 = vsyncpa [#allocation8], 1

</llo_original>
